<compile_context>
chip_gen: v7x
topology: tpu7x:2x2x1
jax: 0.10.0
libtpu: 0.0.40
codegen_flags: <defaults>
</compile_context>

<pallas_src>
import math

import jax
import jax.numpy as jnp
from jax import lax
from jax.experimental import pallas as pl
from jax.experimental.pallas import tpu as pltpu


def _round_up(n, m):
    return ((n + m - 1) // m) * m


def _mlp_kernel(x_ref, w1_ref, b1_ref, w2_ref, b2_ref, w3_ref, b3_ref, o_ref):
    """One batch tile: x (TB, 4) -> o (2, TB); intermediates feature-major / lane-dense."""
    x = x_ref[...]                                        # (TB, 4) f32, batch on sublanes

    # Layer 1 on the MXU (f32 operands).  Contract the size-4 feature axis of the
    # batch-major tile directly (rhs contraction on axis 1) so the result lands
    # feature-major (64, TB) with the batch on the 128-wide lane axis; no
    # materialized (TB,4)->(4,TB) transpose in the kernel body.
    h1 = lax.dot_general(w1_ref[...], x,
                         dimension_numbers=(((1,), (1,)), ((), ())),
                         preferred_element_type=jnp.float32)
    h1 = jnp.maximum(h1 + b1_ref[...], 0.0)               # (64, TB) f32

    # Layers 2/3: bf16 MXU operands + f32 accumulation.  Bias/ReLU stay f32 so a
    # single code path is also correct on v5e (no bf16 VPU); a bf16 tail on
    # v6e/v7x would shave a few more VALU ops but is a minor, generation-specific win.
    h2 = jnp.dot(w2_ref[...], h1.astype(jnp.bfloat16),
                 preferred_element_type=jnp.float32) + b2_ref[...]
    h2 = jnp.maximum(h2, 0.0)                              # (64, TB) f32

    out = jnp.dot(w3_ref[...], h2.astype(jnp.bfloat16),
                  preferred_element_type=jnp.float32) + b3_ref[...]
    o_ref[...] = out.astype(o_ref.dtype)                   # (2, TB) lane-dense store


def _jnp_forward(x, p):
    """Plain-JAX forward (small-batch fast path and correctness reference)."""
    h1 = jnp.maximum(
        jnp.dot(x, p["w1"].T, precision=lax.Precision.HIGHEST) + p["b1"].T, 0.0)
    h2 = jnp.maximum(
        jnp.dot(h1.astype(jnp.bfloat16), p["w2"].T,
                preferred_element_type=jnp.float32) + p["b2"].T, 0.0)
    return jnp.dot(h2.astype(jnp.bfloat16), p["w3"].T,
                   preferred_element_type=jnp.float32) + p["b3"].T


def sampling_policy_forward(x, params, *, block_b=8192, small_batch_threshold=256):
    """SamplingPolicy forward pass.

    x: (B, 4) float32, batch-major (no wrapper-side pad/transpose round trip of x).
    params: torch-layout weights: w1 (64,4) f32, w2 (64,64) bf16, w3 (2,64) bf16,
            biases b1/b2/b3 as (out, 1) f32.
    returns: (B, 2) float32
    """
    B = x.shape[0]

    # Small-batch fast path: the arithmetic is nanoseconds, so the pallas dispatch
    # chain would be 100% launch overhead.  XLA fuses this into one tiny kernel.
    if B <= small_batch_threshold:
        return _jnp_forward(x, params)

    # --- batch-tile selection -------------------------------------------------
    B128 = _round_up(B, 128)
    TB = min(block_b, B128)
    # Keep >= 2 tiles whenever the batch allows it so the ("parallel",) grid axis
    # has work for both TensorCores on v7x.
    if B128 >= 256:
        TB = min(TB, _round_up(B128 // 2, 128))
    B_pad = _round_up(B, TB)
    n_tiles = B_pad // TB

    # Pad only when B is not a multiple of the tile (zero rows are computed and
    # then sliced away; correctness unaffected).
    x_in = x if B_pad == B else jnp.pad(x, ((0, B_pad - B), (0, 0)))

    w1, b1 = params["w1"], params["b1"]
    w2, b2 = params["w2"], params["b2"]
    w3, b3 = params["w3"], params["b3"]

    # Full-array blocks with a constant block index => weights stay VMEM-resident
    # (Pallas never re-DMAs them across grid steps).
    resident = lambda a: pl.BlockSpec(a.shape, lambda i: (0, 0))

    # Rough per-tile VMEM footprint: ~0.8 KiB per batch element (f32 + bf16 copies
    # of the (64, TB) intermediates) plus double-buffered x/out blocks.  Default
    # TB=8192 (~7 MiB) fits every generation's default scoped limit (16 MiB v5e,
    # 32 MiB v6e/v7x); only bump the limit for user-requested giant tiles.
    vmem_est = TB * 832 + (1 << 20)
    compiler_kwargs = dict(dimension_semantics=("parallel",))
    if vmem_est > 14 * (1 << 20):
        compiler_kwargs["vmem_limit_bytes"] = 32 * (1 << 20)

    out_t = pl.pallas_call(
        _mlp_kernel,
        out_shape=jax.ShapeDtypeStruct((2, B_pad), jnp.float32),
        grid=(n_tiles,),
        in_specs=[
            pl.BlockSpec((TB, 4), lambda i: (i, 0)),       # x: pipelined batch tiles
            resident(w1), resident(b1),
            resident(w2), resident(b2),
            resident(w3), resident(b3),
        ],
        out_specs=pl.BlockSpec((2, TB), lambda i: (0, i)),  # lane-dense output store
        compiler_params=pltpu.CompilerParams(**compiler_kwargs),
    )(x_in, w1, b1, w2, b2, w3, b3)

    # Tiny (2, B) -> (B, 2) flip; far cheaper than re-laying-out x on the way in
    # or emitting TB/8 masked 2-lane stores from the kernel.
    return out_t[:, :B].T


def init_params(key):
    """PyTorch nn.Linear default init (U[-1/sqrt(fan_in), +1/sqrt(fan_in)]),
    stored in torch (out_features, in_features) layout; biases as (out, 1)."""
    def linear(key, fan_in, fan_out):
        kw, kb = jax.random.split(key)
        bound = 1.0 / math.sqrt(float(fan_in))
        w = jax.random.uniform(kw, (fan_out, fan_in), jnp.float32, -bound, bound)
        b = jax.random.uniform(kb, (fan_out, 1), jnp.float32, -bound, bound)
        return w, b

    k1, k2, k3 = jax.random.split(key, 3)
    w1, b1 = linear(k1, 4, 64)
    w2, b2 = linear(k2, 64, 64)
    w3, b3 = linear(k3, 64, 2)
    # Layers 2/3 carry bf16 MXU operands (f32 accumulation in-kernel); layer-1
    # weights and all biases stay f32.
    return {"w1": w1, "b1": b1,
            "w2": w2.astype(jnp.bfloat16), "b2": b2,
            "w3": w3.astype(jnp.bfloat16), "b3": b3}


if __name__ == "__main__":
    key = jax.random.PRNGKey(0)
    kx, kp = jax.random.split(key)
    params = init_params(kp)

    # 1) Pallas path: B=512 -> two 256-row tiles, no padding.
    B = 512
    x = jax.random.normal(kx, (B, 4), dtype=jnp.float32)
    out = jax.block_until_ready(sampling_policy_forward(x, params))
    ref = _jnp_forward(x, params)
    assert out.shape == (B, 2), out.shape
    assert jnp.allclose(out, ref, atol=5e-3, rtol=5e-3), "Pallas path mismatch"

    # 2) Pallas path with a ragged batch (exercises the pad + slice handling).
    x2 = jax.random.normal(jax.random.PRNGKey(1), (200, 4), dtype=jnp.float32)
    out2 = jax.block_until_ready(
        sampling_policy_forward(x2, params, small_batch_threshold=0))
    assert out2.shape == (200, 2), out2.shape
    assert jnp.allclose(out2, _jnp_forward(x2, params), atol=5e-3, rtol=5e-3), \
        "ragged Pallas path mismatch"

    # 3) Tiny-batch fast path (pure jnp, no pallas_call).
    x3 = jax.random.normal(jax.random.PRNGKey(2), (8, 4), dtype=jnp.float32)
    out3 = jax.block_until_ready(sampling_policy_forward(x3, params))
    assert out3.shape == (8, 2), out3.shape
    assert jnp.allclose(out3, _jnp_forward(x3, params), atol=5e-3, rtol=5e-3), \
        "fast path mismatch"

    print("KERNEL_OK")
</pallas_src>

<mosaic_0001>
module attributes {stable_mosaic.version = 11 : i64} {
  func.func @_mlp_kernel(%arg0: i32, %arg1: memref<256x4xf32, #tpu.memory_space<vmem>>, %arg2: memref<64x4xf32, #tpu.memory_space<vmem>>, %arg3: memref<64x1xf32, #tpu.memory_space<vmem>>, %arg4: memref<64x64xbf16, #tpu.memory_space<vmem>>, %arg5: memref<64x1xf32, #tpu.memory_space<vmem>>, %arg6: memref<2x64xbf16, #tpu.memory_space<vmem>>, %arg7: memref<2x1xf32, #tpu.memory_space<vmem>>, %arg8: memref<2x256xf32, #tpu.memory_space<vmem>>) attributes {dimension_semantics = [#tpu.dimension_semantics<parallel>], iteration_bounds = array<i64: 2>, scalar_prefetch = 0 : i64, scratch_operands = 0 : i64, tpu.core_type = #tpu.core_type<tc>, window_params = [{transform_indices = @transform_0, window_bounds = array<i64: 256, 4>}, {pipeline_mode = #tpu.pipeline_mode<synchronous>, transform_indices = @transform_1, window_bounds = array<i64: 64, 4>}, {pipeline_mode = #tpu.pipeline_mode<synchronous>, transform_indices = @transform_2, window_bounds = array<i64: 64, 1>}, {pipeline_mode = #tpu.pipeline_mode<synchronous>, transform_indices = @transform_3, window_bounds = array<i64: 64, 64>}, {pipeline_mode = #tpu.pipeline_mode<synchronous>, transform_indices = @transform_4, window_bounds = array<i64: 64, 1>}, {pipeline_mode = #tpu.pipeline_mode<synchronous>, transform_indices = @transform_5, window_bounds = array<i64: 2, 64>}, {pipeline_mode = #tpu.pipeline_mode<synchronous>, transform_indices = @transform_6, window_bounds = array<i64: 2, 1>}, {transform_indices = @transform_7, window_bounds = array<i64: 2, 256>}]} {
    %c0 = arith.constant 0 : index
    %c0_0 = arith.constant 0 : index
    %0 = vector.load %arg1[%c0, %c0_0] : memref<256x4xf32, #tpu.memory_space<vmem>>, vector<256x4xf32>
    %c0_1 = arith.constant 0 : index
    %c0_2 = arith.constant 0 : index
    %1 = vector.load %arg2[%c0_1, %c0_2] : memref<64x4xf32, #tpu.memory_space<vmem>>, vector<64x4xf32>
    %cst = arith.constant dense<0.000000e+00> : vector<64x256xf32>
    %2 = tpu.matmul %1, %0, %cst {dimension_numbers = #tpu.dot_dimension_numbers<[1], [1], [0], [0], [0, 0, 1, 0], [], []>} : vector<64x4xf32>, vector<256x4xf32>, vector<64x256xf32> -> vector<64x256xf32>
    %c0_3 = arith.constant 0 : index
    %c0_4 = arith.constant 0 : index
    %3 = vector.load %arg3[%c0_3, %c0_4] : memref<64x1xf32, #tpu.memory_space<vmem>>, vector<64x1xf32>
    %4 = vector.broadcast %3 : vector<64x1xf32> to vector<64x256xf32>
    %5 = arith.addf %2, %4 : vector<64x256xf32>
    %cst_5 = arith.constant 0.000000e+00 : f32
    %6 = vector.broadcast %cst_5 : f32 to vector<64x256xf32>
    %7 = arith.maximumf %5, %6 : vector<64x256xf32>
    %c0_6 = arith.constant 0 : index
    %c0_7 = arith.constant 0 : index
    %8 = vector.load %arg4[%c0_6, %c0_7] : memref<64x64xbf16, #tpu.memory_space<vmem>>, vector<64x64xbf16>
    %9 = arith.truncf %7 : vector<64x256xf32> to vector<64x256xbf16>
    %cst_8 = arith.constant dense<0.000000e+00> : vector<64x256xf32>
    %10 = tpu.matmul %8, %9, %cst_8 {dimension_numbers = #tpu.dot_dimension_numbers<[1], [0], [0], [1], [0, 0, 1, 1], [], []>} : vector<64x64xbf16>, vector<64x256xbf16>, vector<64x256xf32> -> vector<64x256xf32>
    %c0_9 = arith.constant 0 : index
    %c0_10 = arith.constant 0 : index
    %11 = vector.load %arg5[%c0_9, %c0_10] : memref<64x1xf32, #tpu.memory_space<vmem>>, vector<64x1xf32>
    %12 = vector.broadcast %11 : vector<64x1xf32> to vector<64x256xf32>
    %13 = arith.addf %10, %12 : vector<64x256xf32>
    %cst_11 = arith.constant 0.000000e+00 : f32
    %14 = vector.broadcast %cst_11 : f32 to vector<64x256xf32>
    %15 = arith.maximumf %13, %14 : vector<64x256xf32>
    %c0_12 = arith.constant 0 : index
    %c0_13 = arith.constant 0 : index
    %16 = vector.load %arg6[%c0_12, %c0_13] : memref<2x64xbf16, #tpu.memory_space<vmem>>, vector<2x64xbf16>
    %17 = arith.truncf %15 : vector<64x256xf32> to vector<64x256xbf16>
    %cst_14 = arith.constant dense<0.000000e+00> : vector<2x256xf32>
    %18 = tpu.matmul %16, %17, %cst_14 {dimension_numbers = #tpu.dot_dimension_numbers<[1], [0], [0], [1], [0, 0, 1, 1], [], []>} : vector<2x64xbf16>, vector<64x256xbf16>, vector<2x256xf32> -> vector<2x256xf32>
    %c0_15 = arith.constant 0 : index
    %c0_16 = arith.constant 0 : index
    %19 = vector.load %arg7[%c0_15, %c0_16] : memref<2x1xf32, #tpu.memory_space<vmem>>, vector<2x1xf32>
    %20 = vector.broadcast %19 : vector<2x1xf32> to vector<2x256xf32>
    %21 = arith.addf %18, %20 : vector<2x256xf32>
    %c0_17 = arith.constant 0 : index
    %c0_18 = arith.constant 0 : index
    %22 = vector.load %arg8[%c0_17, %c0_18] : memref<2x256xf32, #tpu.memory_space<vmem>>, vector<2x256xf32>
    tpu.vector_store %arg8[%c0_17, %c0_18], %21 {strides = array<i32>} : memref<2x256xf32, #tpu.memory_space<vmem>>, vector<2x256xf32>,
    return
  }
  func.func @transform_0(%arg0: i32) -> (i32, i32) {
    %c0_i32 = arith.constant 0 : i32
    %c0_i32_0 = arith.constant 0 : i32
    return %arg0, %c0_i32 : i32, i32
  }
  func.func @transform_1(%arg0: i32) -> (i32, i32) {
    %c0_i32 = arith.constant 0 : i32
    %c0_i32_0 = arith.constant 0 : i32
    %c0_i32_1 = arith.constant 0 : i32
    return %c0_i32, %c0_i32_0 : i32, i32
  }
  func.func @transform_2(%arg0: i32) -> (i32, i32) {
    %c0_i32 = arith.constant 0 : i32
    %c0_i32_0 = arith.constant 0 : i32
    %c0_i32_1 = arith.constant 0 : i32
    return %c0_i32, %c0_i32_0 : i32, i32
  }
  func.func @transform_3(%arg0: i32) -> (i32, i32) {
    %c0_i32 = arith.constant 0 : i32
    %c0_i32_0 = arith.constant 0 : i32
    %c0_i32_1 = arith.constant 0 : i32
    return %c0_i32, %c0_i32_0 : i32, i32
  }
  func.func @transform_4(%arg0: i32) -> (i32, i32) {
    %c0_i32 = arith.constant 0 : i32
    %c0_i32_0 = arith.constant 0 : i32
    %c0_i32_1 = arith.constant 0 : i32
    return %c0_i32, %c0_i32_0 : i32, i32
  }
  func.func @transform_5(%arg0: i32) -> (i32, i32) {
    %c0_i32 = arith.constant 0 : i32
    %c0_i32_0 = arith.constant 0 : i32
    %c0_i32_1 = arith.constant 0 : i32
    return %c0_i32, %c0_i32_0 : i32, i32
  }
  func.func @transform_6(%arg0: i32) -> (i32, i32) {
    %c0_i32 = arith.constant 0 : i32
    %c0_i32_0 = arith.constant 0 : i32
    %c0_i32_1 = arith.constant 0 : i32
    return %c0_i32, %c0_i32_0 : i32, i32
  }
  func.func @transform_7(%arg0: i32) -> (i32, i32) {
    %c0_i32 = arith.constant 0 : i32
    %c0_i32_0 = arith.constant 0 : i32
    return %c0_i32, %arg0 : i32, i32
  }
}

</mosaic_0001>

<llo_original>
// kernel: tpu_custom_call.1
$region0: #{tpu_custom_call.1}
  #allocation0 [shape = 'u32[]', space=smem, size = 0x4, offset = 0x4, fixed_abs, tag = 'smem constant byte address 0x4 - core index']
  #allocation1 [shape = 'u32[144,128]{1,0:T(1,128)}', space=vmem, size = 0x12000, scoped, tag = 'internal scratch']
  %s0 = inlined_call_operand.vmem [shape: f32[512,4], index: 0, kind: input, shape index: {}]
  %s1 = inlined_call_operand.vmem [shape: f32[64,4], index: 1, kind: input, shape index: {}]
  %s2 = inlined_call_operand.vmem [shape: f32[64,1], index: 2, kind: input, shape index: {}]
  %s3 = inlined_call_operand.vmem [shape: bf16[64,64], index: 3, kind: input, shape index: {}]
  %s4 = inlined_call_operand.vmem [shape: f32[64,1], index: 4, kind: input, shape index: {}]
  %s5 = inlined_call_operand.vmem [shape: bf16[2,64], index: 5, kind: input, shape index: {}]
  %s6 = inlined_call_operand.vmem [shape: f32[2,1], index: 6, kind: input, shape index: {}]
  %s7 = inlined_call_operand.hbm [shape: f32[2,512], index: 7, kind: output, shape index: {}]
  %s8 = sld [smem:[#allocation0]]
  $region61: #{tpu_custom_call.1} parent=0
    _
  %s10 = ssub.s32 1, %s8
  %s11 = scalar_select 0, %s10, %s8
  $region1: #{tpu_custom_call.1} parent=0
    #allocation2 [shape = 'u8[4096]{0}', space=vmem, size = 0x1000, scoped, tag = 'output window, operand 0']
    #allocation3 [shape = 's32[2]{0}', space=sflag, size = 0x8, scoped, tag = 'scoped memory for tpu_custom_call.1']
    %12 = vsyncpa [#allocation3], 0
    %s13 = scalar_lea.sflag [#allocation3], 1
    %14 = vsyncpa %s13, 0
    loop: start=0, step=1, limit=4
    $region2: #{tpu_custom_call.1} parent=1 // loop_pre_header
      _
    $region3: #{tpu_custom_call.1} parent=1 // loop_header
      %s16 = sphi 0, %s20
      %p17 = scmp.ge.s32.totalorder %s16, 4
      %s26 = sphi 0, %s28
      %s29 = sphi 0, %s26
      %s30 = sphi 0, %s29
      %s46 = sphi 0, %s30
      %s50 = sphi 0, %s50
      %s52 = sphi 0, %s50
      %s53 = sphi 0, %s52
      %s67 = sphi 0, %s53
      %s71 = sphi 0, %s71
      %s73 = sphi 0, %s71
      %s74 = sphi 0, %s73
      %s88 = sphi 0, %s74
      %s92 = sphi 0, %s92
      %s94 = sphi 0, %s92
      %s95 = sphi 0, %s94
      %s109 = sphi 0, %s95
      %s113 = sphi 0, %s113
      %s115 = sphi 0, %s113
      %s116 = sphi 0, %s115
      %s130 = sphi 0, %s116
      %s134 = sphi 0, %s134
      %s136 = sphi 0, %s134
      %s137 = sphi 0, %s136
      %s151 = sphi 0, %s137
      %s155 = sphi 0, %s155
      %s157 = sphi 0, %s155
      %s158 = sphi 0, %s157
      %s172 = sphi 0, %s158
      %s178 = sphi 0, %s180
      %s181 = sphi 0, %s178
      %s182 = sphi 0, %s181
      %s198 = sphi 0, %s182
    $region4: #{tpu_custom_call.1} parent=1 // loop_header_branch
      %19 = sbr.rel (%p17) target = $region8
    $region5: #{tpu_custom_call.1} parent=1 // loop_body
      %s21 = ssub.s32 %s16, 1
      %s22 = ssub.s32 %s16, 2
      %s23 = sadd.s32 %s16, 1
      %s24 = ssub.s32 %s16, %s23
      %p25 = scmp.eq.s32.totalorder %s24, 0
      %s27 = sadd.s32 %s26, 1
      %s28 = scalar_select %p25, %s26, %s27
      %p31 = pneg %p25
      %p32 = scmp.eq.s32.totalorder %s16, 1
      %p33 = por %p31, %p32
      %p34 = scmp.ne.s32.totalorder %s26, %s29
      %p35 = scmp.eq.s32.totalorder %s16, 0
      %p36 = por %p34, %p35
      %p37 = scmp.ne.s32.totalorder %s26, %s29
      %p38 = scmp.eq.s32.totalorder %s21, 1
      %p39 = por %p37, %p38
      %p40 = scmp.ne.s32.totalorder %s29, %s30
      %p41 = scmp.eq.s32.totalorder %s21, 0
      %p42 = por %p40, %p41
      %p43 = scmp.ne.s32.totalorder %s29, %s30
      %p44 = scmp.eq.s32.totalorder %s22, 1
      %p45 = por %p43, %p44
      %p47 = scmp.ne.s32.totalorder %s30, %s46
      %p48 = scmp.eq.s32.totalorder %s22, 0
      %p49 = por %p47, %p48
      %s51 = sadd.s32 %s50, 1
      %p54 = scmp.eq.s32.totalorder %s16, 1
      %p55 = scmp.ne.s32.totalorder %s50, %s52
      %p56 = scmp.eq.s32.totalorder %s16, 0
      %p57 = por %p55, %p56
      %p58 = scmp.ne.s32.totalorder %s50, %s52
      %p59 = scmp.eq.s32.totalorder %s21, 1
      %p60 = por %p58, %p59
      %p61 = scmp.ne.s32.totalorder %s52, %s53
      %p62 = scmp.eq.s32.totalorder %s21, 0
      %p63 = por %p61, %p62
      %p64 = scmp.ne.s32.totalorder %s52, %s53
      %p65 = scmp.eq.s32.totalorder %s22, 1
      %p66 = por %p64, %p65
      %p68 = scmp.ne.s32.totalorder %s53, %s67
      %p69 = scmp.eq.s32.totalorder %s22, 0
      %p70 = por %p68, %p69
      %s72 = sadd.s32 %s71, 1
      %p75 = scmp.eq.s32.totalorder %s16, 1
      %p76 = scmp.ne.s32.totalorder %s71, %s73
      %p77 = scmp.eq.s32.totalorder %s16, 0
      %p78 = por %p76, %p77
      %p79 = scmp.ne.s32.totalorder %s71, %s73
      %p80 = scmp.eq.s32.totalorder %s21, 1
      %p81 = por %p79, %p80
      %p82 = scmp.ne.s32.totalorder %s73, %s74
      %p83 = scmp.eq.s32.totalorder %s21, 0
      %p84 = por %p82, %p83
      %p85 = scmp.ne.s32.totalorder %s73, %s74
      %p86 = scmp.eq.s32.totalorder %s22, 1
      %p87 = por %p85, %p86
      %p89 = scmp.ne.s32.totalorder %s74, %s88
      %p90 = scmp.eq.s32.totalorder %s22, 0
      %p91 = por %p89, %p90
      %s93 = sadd.s32 %s92, 1
      %p96 = scmp.eq.s32.totalorder %s16, 1
      %p97 = scmp.ne.s32.totalorder %s92, %s94
      %p98 = scmp.eq.s32.totalorder %s16, 0
      %p99 = por %p97, %p98
      %p100 = scmp.ne.s32.totalorder %s92, %s94
      %p101 = scmp.eq.s32.totalorder %s21, 1
      %p102 = por %p100, %p101
      %p103 = scmp.ne.s32.totalorder %s94, %s95
      %p104 = scmp.eq.s32.totalorder %s21, 0
      %p105 = por %p103, %p104
      %p106 = scmp.ne.s32.totalorder %s94, %s95
      %p107 = scmp.eq.s32.totalorder %s22, 1
      %p108 = por %p106, %p107
      %p110 = scmp.ne.s32.totalorder %s95, %s109
      %p111 = scmp.eq.s32.totalorder %s22, 0
      %p112 = por %p110, %p111
      %s114 = sadd.s32 %s113, 1
      %p117 = scmp.eq.s32.totalorder %s16, 1
      %p118 = scmp.ne.s32.totalorder %s113, %s115
      %p119 = scmp.eq.s32.totalorder %s16, 0
      %p120 = por %p118, %p119
      %p121 = scmp.ne.s32.totalorder %s113, %s115
      %p122 = scmp.eq.s32.totalorder %s21, 1
      %p123 = por %p121, %p122
      %p124 = scmp.ne.s32.totalorder %s115, %s116
      %p125 = scmp.eq.s32.totalorder %s21, 0
      %p126 = por %p124, %p125
      %p127 = scmp.ne.s32.totalorder %s115, %s116
      %p128 = scmp.eq.s32.totalorder %s22, 1
      %p129 = por %p127, %p128
      %p131 = scmp.ne.s32.totalorder %s116, %s130
      %p132 = scmp.eq.s32.totalorder %s22, 0
      %p133 = por %p131, %p132
      %s135 = sadd.s32 %s134, 1
      %p138 = scmp.eq.s32.totalorder %s16, 1
      %p139 = scmp.ne.s32.totalorder %s134, %s136
      %p140 = scmp.eq.s32.totalorder %s16, 0
      %p141 = por %p139, %p140
      %p142 = scmp.ne.s32.totalorder %s134, %s136
      %p143 = scmp.eq.s32.totalorder %s21, 1
      %p144 = por %p142, %p143
      %p145 = scmp.ne.s32.totalorder %s136, %s137
      %p146 = scmp.eq.s32.totalorder %s21, 0
      %p147 = por %p145, %p146
      %p148 = scmp.ne.s32.totalorder %s136, %s137
      %p149 = scmp.eq.s32.totalorder %s22, 1
      %p150 = por %p148, %p149
      %p152 = scmp.ne.s32.totalorder %s137, %s151
      %p153 = scmp.eq.s32.totalorder %s22, 0
      %p154 = por %p152, %p153
      %s156 = sadd.s32 %s155, 1
      %p159 = scmp.eq.s32.totalorder %s16, 1
      %p160 = scmp.ne.s32.totalorder %s155, %s157
      %p161 = scmp.eq.s32.totalorder %s16, 0
      %p162 = por %p160, %p161
      %p163 = scmp.ne.s32.totalorder %s155, %s157
      %p164 = scmp.eq.s32.totalorder %s21, 1
      %p165 = por %p163, %p164
      %p166 = scmp.ne.s32.totalorder %s157, %s158
      %p167 = scmp.eq.s32.totalorder %s21, 0
      %p168 = por %p166, %p167
      %p169 = scmp.ne.s32.totalorder %s157, %s158
      %p170 = scmp.eq.s32.totalorder %s22, 1
      %p171 = por %p169, %p170
      %p173 = scmp.ne.s32.totalorder %s158, %s172
      %p174 = scmp.eq.s32.totalorder %s22, 0
      %p175 = por %p173, %p174
      %s176 = ssub.s32 %s16, %s23
      %p177 = scmp.eq.s32.totalorder %s176, 0
      %s179 = sadd.s32 %s178, 1
      %s180 = scalar_select %p177, %s178, %s179
      %p183 = pneg %p177
      %p184 = scmp.eq.s32.totalorder %s16, 1
      %p185 = por %p183, %p184
      %p186 = scmp.ne.s32.totalorder %s178, %s181
      %p187 = scmp.eq.s32.totalorder %s16, 0
      %p188 = por %p186, %p187
      %p189 = scmp.ne.s32.totalorder %s178, %s181
      %p190 = scmp.eq.s32.totalorder %s21, 1
      %p191 = por %p189, %p190
      %p192 = scmp.ne.s32.totalorder %s181, %s182
      %p193 = scmp.eq.s32.totalorder %s21, 0
      %p194 = por %p192, %p193
      %p195 = scmp.ne.s32.totalorder %s181, %s182
      %p196 = scmp.eq.s32.totalorder %s22, 1
      %p197 = por %p195, %p196
      %p199 = scmp.ne.s32.totalorder %s182, %s198
      %p200 = scmp.eq.s32.totalorder %s22, 0
      %p201 = por %p199, %p200
      %p202 = scmp.le.s32.totalorder 1, %s16
      %p203 = scmp.lt.s32.totalorder %s16, 3
      %p204 = pnand %p202, %p203
      %p205 = pneg %p204
      // Predicated region
      $region9: #{tpu_custom_call.1} parent=5 // pred_check
        _
      $region10: #{tpu_custom_call.1} parent=5 // pred_check_branch
        %207 = sbr.rel (%p204) target = $region12
      $region11: #{tpu_custom_call.1} parent=5 // pred_region
        %s208 = ssub.s32 %s16, 1
        // Predicated region
        $region13: #{tpu_custom_call.1} parent=11 // pred_check
          %p209 = pneg %p63
        $region14: #{tpu_custom_call.1} parent=11 // pred_check_branch
          %211 = sbr.rel (%p209) target = $region16
        $region15: #{tpu_custom_call.1} parent=11 // pred_region
          _
        $region16: #{tpu_custom_call.1} parent=11 // pred_fallthru
          _
        // Predicated region
        $region17: #{tpu_custom_call.1} parent=11 // pred_check
          %p212 = pneg %p84
        $region18: #{tpu_custom_call.1} parent=11 // pred_check_branch
          %214 = sbr.rel (%p212) target = $region20
        $region19: #{tpu_custom_call.1} parent=11 // pred_region
          _
        $region20: #{tpu_custom_call.1} parent=11 // pred_fallthru
          _
        // Predicated region
        $region21: #{tpu_custom_call.1} parent=11 // pred_check
          %p215 = pneg %p105
        $region22: #{tpu_custom_call.1} parent=11 // pred_check_branch
          %217 = sbr.rel (%p215) target = $region24
        $region23: #{tpu_custom_call.1} parent=11 // pred_region
          _
        $region24: #{tpu_custom_call.1} parent=11 // pred_fallthru
          _
        // Predicated region
        $region25: #{tpu_custom_call.1} parent=11 // pred_check
          %p218 = pneg %p126
        $region26: #{tpu_custom_call.1} parent=11 // pred_check_branch
          %220 = sbr.rel (%p218) target = $region28
        $region27: #{tpu_custom_call.1} parent=11 // pred_region
          _
        $region28: #{tpu_custom_call.1} parent=11 // pred_fallthru
          _
        // Predicated region
        $region29: #{tpu_custom_call.1} parent=11 // pred_check
          %p221 = pneg %p147
        $region30: #{tpu_custom_call.1} parent=11 // pred_check_branch
          %223 = sbr.rel (%p221) target = $region32
        $region31: #{tpu_custom_call.1} parent=11 // pred_region
          _
        $region32: #{tpu_custom_call.1} parent=11 // pred_fallthru
          _
        // Predicated region
        $region33: #{tpu_custom_call.1} parent=11 // pred_check
          %p224 = pneg %p168
        $region34: #{tpu_custom_call.1} parent=11 // pred_check_branch
          %226 = sbr.rel (%p224) target = $region36
        $region35: #{tpu_custom_call.1} parent=11 // pred_region
          _
        $region36: #{tpu_custom_call.1} parent=11 // pred_fallthru
          _
      $region12: #{tpu_custom_call.1} parent=5 // pred_fallthru
        _
      %p227 = scmp.lt.s32.totalorder %s16, 2
      // Predicated region
      $region37: #{tpu_custom_call.1} parent=5 // pred_check
        %p228 = pneg %p227
      $region38: #{tpu_custom_call.1} parent=5 // pred_check_branch
        %230 = sbr.rel (%p228) target = $region40
      $region39: #{tpu_custom_call.1} parent=5 // pred_region
        // Predicated region
        $region41: #{tpu_custom_call.1} parent=39 // pred_check
          %p231 = pneg %p36
        $region42: #{tpu_custom_call.1} parent=39 // pred_check_branch
          %233 = sbr.rel (%p231) target = $region44
        $region43: #{tpu_custom_call.1} parent=39 // pred_region
          %s234 = smul.u32 32, %s16
          %p235 = scmp.lt.s32.totalorder %s234, 63
          %s236 = scalar_select %p235, %s234, 63
          %s237 = smul.addr %s236, 8
          %s238 = scalar_lea.vmem %s0, %s237
          %s239 = smul.u32 32, %s16
        $region44: #{tpu_custom_call.1} parent=39 // pred_fallthru
          _
      $region40: #{tpu_custom_call.1} parent=5 // pred_fallthru
        _
      %p240 = scmp.le.s32.totalorder 1, %s16
      %p241 = scmp.lt.s32.totalorder %s16, 3
      %p242 = pnand %p240, %p241
      %p243 = pneg %p242
      // Predicated region
      $region45: #{tpu_custom_call.1} parent=5 // pred_check
        _
      $region46: #{tpu_custom_call.1} parent=5 // pred_check_branch
        %245 = sbr.rel (%p242) target = $region48
      $region47: #{tpu_custom_call.1} parent=5 // pred_region
        %s246 = ssub.s32 %s16, 1
        %s247 = smul.u32 32, %s21
        %p248 = scmp.lt.s32.totalorder %s247, 63
        %s249 = scalar_select %p248, %s247, 63
        %s250 = smul.addr %s249, 8
        %s251 = scalar_lea.vmem %s0, %s250
        %p252 = pneg %p42
        %p253 = pneg %p39
        %p254 = pneg %p63
        %p255 = pneg %p60
        %p256 = pneg %p84
        %p257 = pneg %p81
        %p258 = pneg %p105
        %p259 = pneg %p102
        %p260 = pneg %p126
        %p261 = pneg %p123
        %p262 = pneg %p147
        %p263 = pneg %p144
        %p264 = pneg %p168
        %p265 = pneg %p165
        %p266 = pneg %p194
        %p267 = pneg %p191
        %s268 = sand.u32 %s181, 1
        %s269 = scalar_lea.sflag [#allocation3], %s268
        %s270 = sand.u32 %s181, 1
        %s271 = smul.addr %s270, 4
        %s272 = scalar_lea.vmem [#allocation2], %s271
        %s273 = smul.u32 32, %s21
        %p274 = scmp.lt.s32.totalorder %s273, 63
        %s275 = scalar_select %p274, %s273, 63
        %s276 = smul.addr %s275, 8
        %s277 = scalar_lea.vmem %s0, %s276
        %s278 = smul.u32 32, %s21
        %s279 = smul.u32 2, %s21
        %v281 = vld [vmem:[%s277] sm:$0xff]
        %v282 = vld [vmem:[%s277 + $0x8] sm:$0xff]
        %v283 = vld [vmem:[%s277 + $0x10] sm:$0xff]
        %v284 = vld [vmem:[%s277 + $0x18] sm:$0xff]
        %v285 = vld [vmem:[%s277 + $0x20] sm:$0xff]
        %v286 = vld [vmem:[%s277 + $0x28] sm:$0xff]
        %v287 = vld [vmem:[%s277 + $0x30] sm:$0xff]
        %v288 = vld [vmem:[%s277 + $0x38] sm:$0xff]
        %v289 = vld [vmem:[%s277 + $0x40] sm:$0xff]
        %v290 = vld [vmem:[%s277 + $0x48] sm:$0xff]
        %v291 = vld [vmem:[%s277 + $0x50] sm:$0xff]
        %v292 = vld [vmem:[%s277 + $0x58] sm:$0xff]
        %v293 = vld [vmem:[%s277 + $0x60] sm:$0xff]
        %v294 = vld [vmem:[%s277 + $0x68] sm:$0xff]
        %v295 = vld [vmem:[%s277 + $0x70] sm:$0xff]
        %v296 = vld [vmem:[%s277 + $0x78] sm:$0xff]
        %v297 = vld [vmem:[%s277 + $0x80] sm:$0xff]
        %v298 = vld [vmem:[%s277 + $0x88] sm:$0xff]
        %v299 = vld [vmem:[%s277 + $0x90] sm:$0xff]
        %v300 = vld [vmem:[%s277 + $0x98] sm:$0xff]
        %v301 = vld [vmem:[%s277 + $0xa0] sm:$0xff]
        %v302 = vld [vmem:[%s277 + $0xa8] sm:$0xff]
        %v303 = vld [vmem:[%s277 + $0xb0] sm:$0xff]
        %v304 = vld [vmem:[%s277 + $0xb8] sm:$0xff]
        %v305 = vld [vmem:[%s277 + $0xc0] sm:$0xff]
        %v306 = vld [vmem:[%s277 + $0xc8] sm:$0xff]
        %v307 = vld [vmem:[%s277 + $0xd0] sm:$0xff]
        %v308 = vld [vmem:[%s277 + $0xd8] sm:$0xff]
        %v309 = vld [vmem:[%s277 + $0xe0] sm:$0xff]
        %v310 = vld [vmem:[%s277 + $0xe8] sm:$0xff]
        %v311 = vld [vmem:[%s277 + $0xf0] sm:$0xff]
        %v312 = vld [vmem:[%s277 + $0xf8] sm:$0xff]
        %v313 = vld [vmem:[%s1] sm:$0xff]
        %v314 = vld [vmem:[%s1 + $0x8] sm:$0xff]
        %v315 = vld [vmem:[%s1 + $0x10] sm:$0xff]
        %v316 = vld [vmem:[%s1 + $0x18] sm:$0xff]
        %v317 = vld [vmem:[%s1 + $0x20] sm:$0xff]
        %v318 = vld [vmem:[%s1 + $0x28] sm:$0xff]
        %v319 = vld [vmem:[%s1 + $0x30] sm:$0xff]
        %v320 = vld [vmem:[%s1 + $0x38] sm:$0xff]
        %v321 = vld [vmem:[%s2] sm:$0xff]
        %v322 = vld [vmem:[%s2 + $0x8] sm:$0xff]
        %v323 = vld [vmem:[%s2 + $0x10] sm:$0xff]
        %v324 = vld [vmem:[%s2 + $0x18] sm:$0xff]
        %v325 = vld [vmem:[%s2 + $0x20] sm:$0xff]
        %v326 = vld [vmem:[%s2 + $0x28] sm:$0xff]
        %v327 = vld [vmem:[%s2 + $0x30] sm:$0xff]
        %v328 = vld [vmem:[%s2 + $0x38] sm:$0xff]
        %330 = vset.pattern.permute.xlu0 0
        %331 = vperm.xlu0 %330, %v321
        %v332 = vpop.permute.xlu0 %331
        %335 = vset.pattern.permute.xlu0 0
        %336 = vperm.xlu0 %335, %v322
        %v337 = vpop.permute.xlu0 %336
        %340 = vset.pattern.permute.xlu0 0
        %341 = vperm.xlu0 %340, %v323
        %v342 = vpop.permute.xlu0 %341
        %345 = vset.pattern.permute.xlu0 0
        %346 = vperm.xlu0 %345, %v324
        %v347 = vpop.permute.xlu0 %346
        %350 = vset.pattern.permute.xlu0 0
        %351 = vperm.xlu0 %350, %v325
        %v352 = vpop.permute.xlu0 %351
        %355 = vset.pattern.permute.xlu0 0
        %356 = vperm.xlu0 %355, %v326
        %v357 = vpop.permute.xlu0 %356
        %360 = vset.pattern.permute.xlu0 0
        %361 = vperm.xlu0 %360, %v327
        %v362 = vpop.permute.xlu0 %361
        %365 = vset.pattern.permute.xlu0 0
        %366 = vperm.xlu0 %365, %v328
        %v367 = vpop.permute.xlu0 %366
        %vm369 = vcmask 31744
        %v371 = vsel %vm369, %v313, 0
        %v374 = vsel %vm369, %v314, 0
        %v377 = vsel %vm369, %v315, 0
        %v380 = vsel %vm369, %v316, 0
        %v383 = vsel %vm369, %v317, 0
        %v386 = vsel %vm369, %v318, 0
        %v389 = vsel %vm369, %v319, 0
        %v392 = vsel %vm369, %v320, 0
        %v395 = vsel %vm369, %v281, 0
        %v398 = vsel %vm369, %v282, 0
        %v401 = vsel %vm369, %v283, 0
        %v404 = vsel %vm369, %v284, 0
        %v407 = vsel %vm369, %v285, 0
        %v410 = vsel %vm369, %v286, 0
        %v413 = vsel %vm369, %v287, 0
        %v416 = vsel %vm369, %v288, 0
        %v419 = vsel %vm369, %v289, 0
        %v422 = vsel %vm369, %v290, 0
        %v425 = vsel %vm369, %v291, 0
        %v428 = vsel %vm369, %v292, 0
        %v431 = vsel %vm369, %v293, 0
        %v434 = vsel %vm369, %v294, 0
        %v437 = vsel %vm369, %v295, 0
        %v440 = vsel %vm369, %v296, 0
        %v443 = vsel %vm369, %v297, 0
        %v446 = vsel %vm369, %v298, 0
        %v449 = vsel %vm369, %v299, 0
        %v452 = vsel %vm369, %v300, 0
        %v455 = vsel %vm369, %v301, 0
        %v458 = vsel %vm369, %v302, 0
        %v461 = vsel %vm369, %v303, 0
        %v464 = vsel %vm369, %v304, 0
        %v467 = vsel %vm369, %v305, 0
        %v470 = vsel %vm369, %v306, 0
        %v473 = vsel %vm369, %v307, 0
        %v476 = vsel %vm369, %v308, 0
        %v479 = vsel %vm369, %v309, 0
        %v482 = vsel %vm369, %v310, 0
        %v485 = vsel %vm369, %v311, 0
        %v488 = vsel %vm369, %v312, 0
        %490 = vmatprep.subr.mxu0 0.0
        %491 = vmatpush1.xpose.msra.mxu0 %v395
        %492 = vmatprep.subr.mxu0 0.0
        %493 = vmatpush1.xpose.msra.mxu0 %v398
        %494 = vmatprep.subr.mxu0 0.0
        %495 = vmatpush1.xpose.msra.mxu0 %v401
        %496 = vmatprep.subr.mxu0 0.0
        %497 = vmatpush1.xpose.msra.mxu0 %v404
        %498 = vmatprep.subr.mxu0 0.0
        %499 = vmatpush1.xpose.msra.mxu0 %v407
        %500 = vmatprep.subr.mxu0 0.0
        %501 = vmatpush1.xpose.msra.mxu0 %v410
        %502 = vmatprep.subr.mxu0 0.0
        %503 = vmatpush1.xpose.msra.mxu0 %v413
        %504 = vmatprep.subr.mxu0 0.0
        %505 = vmatpush1.xpose.msra.mxu0 %v416
        %506 = vmatprep.subr.mxu0 0.0
        %507 = vmatpush1.xpose.msra.mxu0 %v419
        %508 = vmatprep.subr.mxu0 0.0
        %509 = vmatpush1.xpose.msra.mxu0 %v422
        %510 = vmatprep.subr.mxu0 0.0
        %511 = vmatpush1.xpose.msra.mxu0 %v425
        %512 = vmatprep.subr.mxu0 0.0
        %513 = vmatpush1.xpose.msra.mxu0 %v428
        %514 = vmatprep.subr.mxu0 0.0
        %515 = vmatpush1.xpose.msra.mxu0 %v431
        %516 = vmatprep.subr.mxu0 0.0
        %517 = vmatpush1.xpose.msra.mxu0 %v434
        %518 = vmatprep.subr.mxu0 0.0
        %519 = vmatpush1.xpose.msra.mxu0 %v437
        %520 = vmatprep.subr.mxu0 0.0
        %521 = vmatpush1.xpose.msra.mxu0 %v440
        %522 = vmatprep.subr.mxu0 0.0
        %523 = vmatpush1.xpose.msra.mxu0 %v443
        %524 = vmatprep.subr.mxu0 0.0
        %525 = vmatpush1.xpose.msra.mxu0 %v446
        %526 = vmatprep.subr.mxu0 0.0
        %527 = vmatpush1.xpose.msra.mxu0 %v449
        %528 = vmatprep.subr.mxu0 0.0
        %529 = vmatpush1.xpose.msra.mxu0 %v452
        %530 = vmatprep.subr.mxu0 0.0
        %531 = vmatpush1.xpose.msra.mxu0 %v455
        %532 = vmatprep.subr.mxu0 0.0
        %533 = vmatpush1.xpose.msra.mxu0 %v458
        %534 = vmatprep.subr.mxu0 0.0
        %535 = vmatpush1.xpose.msra.mxu0 %v461
        %536 = vmatprep.subr.mxu0 0.0
        %537 = vmatpush1.xpose.msra.mxu0 %v464
        %538 = vmatprep.subr.mxu0 0.0
        %539 = vmatpush1.xpose.msra.mxu0 %v467
        %540 = vmatprep.subr.mxu0 0.0
        %541 = vmatpush1.xpose.msra.mxu0 %v470
        %542 = vmatprep.subr.mxu0 0.0
        %543 = vmatpush1.xpose.msra.mxu0 %v473
        %544 = vmatprep.subr.mxu0 0.0
        %545 = vmatpush1.xpose.msra.mxu0 %v476
        %546 = vmatprep.subr.mxu0 0.0
        %547 = vmatpush1.xpose.msra.mxu0 %v479
        %548 = vmatprep.subr.mxu0 0.0
        %549 = vmatpush1.xpose.msra.mxu0 %v482
        %550 = vmatprep.subr.mxu0 0.0
        %551 = vmatpush1.xpose.msra.mxu0 %v485
        %552 = vmatprep.subr.mxu0 0.0
        %553 = vmatpush1.xpose.msra.mxu0 %v488
        %554 = vmatprep.mubr.f32.mxu0 0.0
        %555 = vmatmul.mubr.f32.gmra.mrb[0].mxu0 %v371
        %v556 = vpop.f32.mrb[0].mxu0
        %v557 = vadd.f32 %v332, %v556
        %v558 = vpop.f32.mrb[0].mxu0
        %v559 = vadd.f32 %v332, %v558
        %560 = vmatprep.mubr.f32.mxu0 0.0
        %561 = vmatmul.mubr.f32.gmra.mrb[0].mxu0 %v374
        %v562 = vpop.f32.mrb[0].mxu0
        %v563 = vadd.f32 %v337, %v562
        %v564 = vpop.f32.mrb[0].mxu0
        %v565 = vadd.f32 %v337, %v564
        %566 = vmatprep.mubr.f32.mxu0 0.0
        %567 = vmatmul.mubr.f32.gmra.mrb[0].mxu0 %v377
        %v568 = vpop.f32.mrb[0].mxu0
        %v569 = vadd.f32 %v342, %v568
        %v570 = vpop.f32.mrb[0].mxu0
        %v571 = vadd.f32 %v342, %v570
        %572 = vmatprep.mubr.f32.mxu0 0.0
        %573 = vmatmul.mubr.f32.gmra.mrb[0].mxu0 %v380
        %v574 = vpop.f32.mrb[0].mxu0
        %v575 = vadd.f32 %v347, %v574
        %v576 = vpop.f32.mrb[0].mxu0
        %v577 = vadd.f32 %v347, %v576
        %578 = vmatprep.mubr.f32.mxu0 0.0
        %579 = vmatmul.mubr.f32.gmra.mrb[0].mxu0 %v383
        %v580 = vpop.f32.mrb[0].mxu0
        %v581 = vadd.f32 %v352, %v580
        %v582 = vpop.f32.mrb[0].mxu0
        %v583 = vadd.f32 %v352, %v582
        %584 = vmatprep.mubr.f32.mxu0 0.0
        %585 = vmatmul.mubr.f32.gmra.mrb[0].mxu0 %v386
        %v586 = vpop.f32.mrb[0].mxu0
        %v587 = vadd.f32 %v357, %v586
        %v588 = vpop.f32.mrb[0].mxu0
        %v589 = vadd.f32 %v357, %v588
        %590 = vmatprep.mubr.f32.mxu0 0.0
        %591 = vmatmul.mubr.f32.gmra.mrb[0].mxu0 %v389
        %v592 = vpop.f32.mrb[0].mxu0
        %v593 = vadd.f32 %v362, %v592
        %v594 = vpop.f32.mrb[0].mxu0
        %v595 = vadd.f32 %v362, %v594
        %596 = vmatprep.mubr.f32.mxu0 0.0
        %597 = vmatmul.mubr.f32.gmra.mrb[0].mxu0 %v392
        %v598 = vpop.f32.mrb[0].mxu0
        %v599 = vadd.f32 %v367, %v598
        %v600 = vpop.f32.mrb[0].mxu0
        %v601 = vadd.f32 %v367, %v600
        %602 = vdwg.mxu0
        %v603 = vmax.f32 %v557, 0.0
        %v604 = vmax.f32 %v559, 0.0
        %v605 = vmax.f32 %v563, 0.0
        %v606 = vmax.f32 %v565, 0.0
        %v607 = vmax.f32 %v569, 0.0
        %v608 = vmax.f32 %v571, 0.0
        %v609 = vmax.f32 %v575, 0.0
        %v610 = vmax.f32 %v577, 0.0
        %v611 = vmax.f32 %v581, 0.0
        %v612 = vmax.f32 %v583, 0.0
        %v613 = vmax.f32 %v587, 0.0
        %v614 = vmax.f32 %v589, 0.0
        %v615 = vmax.f32 %v593, 0.0
        %v616 = vmax.f32 %v595, 0.0
        %v617 = vmax.f32 %v599, 0.0
        %v618 = vmax.f32 %v601, 0.0
        %v619 = vld [vmem:[%s3] sm:$0xf]
        %v620 = vld [vmem:[%s3 + $0x4] sm:$0xf]
        %v621 = vld [vmem:[%s3 + $0x8] sm:$0xf]
        %v622 = vld [vmem:[%s3 + $0xc] sm:$0xf]
        %v623 = vld [vmem:[%s3 + $0x10] sm:$0xf]
        %v624 = vld [vmem:[%s3 + $0x14] sm:$0xf]
        %v625 = vld [vmem:[%s3 + $0x18] sm:$0xf]
        %v626 = vld [vmem:[%s3 + $0x1c] sm:$0xf]
        %v627 = vpack.c.bf16 %v605, %v603
        %v628 = vpack.c.bf16 %v606, %v604
        %v629 = vpack.c.bf16 %v609, %v607
        %v630 = vpack.c.bf16 %v610, %v608
        %v631 = vpack.c.bf16 %v613, %v611
        %v632 = vpack.c.bf16 %v614, %v612
        %v633 = vpack.c.bf16 %v617, %v615
        %v634 = vpack.c.bf16 %v618, %v616
        %v635 = vld [vmem:[%s4] sm:$0xff]
        %v636 = vld [vmem:[%s4 + $0x8] sm:$0xff]
        %v637 = vld [vmem:[%s4 + $0x10] sm:$0xff]
        %v638 = vld [vmem:[%s4 + $0x18] sm:$0xff]
        %v639 = vld [vmem:[%s4 + $0x20] sm:$0xff]
        %v640 = vld [vmem:[%s4 + $0x28] sm:$0xff]
        %v641 = vld [vmem:[%s4 + $0x30] sm:$0xff]
        %v642 = vld [vmem:[%s4 + $0x38] sm:$0xff]
        %644 = vset.pattern.permute.xlu0 0
        %645 = vperm.xlu0 %644, %v635
        %v646 = vpop.permute.xlu0 %645
        %649 = vset.pattern.permute.xlu0 0
        %650 = vperm.xlu0 %649, %v636
        %v651 = vpop.permute.xlu0 %650
        %654 = vset.pattern.permute.xlu0 0
        %655 = vperm.xlu0 %654, %v637
        %v656 = vpop.permute.xlu0 %655
        %659 = vset.pattern.permute.xlu0 0
        %660 = vperm.xlu0 %659, %v638
        %v661 = vpop.permute.xlu0 %660
        %664 = vset.pattern.permute.xlu0 0
        %665 = vperm.xlu0 %664, %v639
        %v666 = vpop.permute.xlu0 %665
        %669 = vset.pattern.permute.xlu0 0
        %670 = vperm.xlu0 %669, %v640
        %v671 = vpop.permute.xlu0 %670
        %674 = vset.pattern.permute.xlu0 0
        %675 = vperm.xlu0 %674, %v641
        %v676 = vpop.permute.xlu0 %675
        %679 = vset.pattern.permute.xlu0 0
        %680 = vperm.xlu0 %679, %v642
        %v681 = vpop.permute.xlu0 %680
        %v691 = vunpack.c.l.b16 %v619
        %v692 = vunpack.c.l.b16 %v620
        %v693 = vunpack.c.l.b16 %v621
        %v694 = vunpack.c.l.b16 %v622
        %v695 = vunpack.c.l.b16 %v623
        %v696 = vunpack.c.l.b16 %v624
        %v697 = vunpack.c.l.b16 %v625
        %v698 = vunpack.c.l.b16 %v626
        %v699 = vpack.c.b16 %v692, %v691
        %v700 = vpack.c.b16 %v694, %v693
        %v701 = vpack.c.b16 %v696, %v695
        %v702 = vpack.c.b16 %v698, %v697
        %vm703 = vcmask 523264
        %v705 = vsel %vm703, %v699, 0
        %v708 = vsel %vm703, %v700, 0
        %v711 = vsel %vm703, %v701, 0
        %v714 = vsel %vm703, %v702, 0
        %716 = vmatprep.subr.bf16.mxu0 %v628
        %717 = vmatpush1.bf16.msra.mxu0 %v627
        %718 = vmatprep.subr.bf16.mxu0 %v630
        %719 = vmatpush1.bf16.msra.mxu0 %v629
        %720 = vmatprep.subr.bf16.mxu0 %v632
        %721 = vmatpush1.bf16.msra.mxu0 %v631
        %722 = vmatprep.subr.bf16.mxu0 %v634
        %723 = vmatpush1.bf16.msra.mxu0 %v633
        %724 = vmatprep.subr.bf16.mxu0 0
        %725 = vmatpush1.bf16.msra.mxu0 0
        %726 = vmatprep.subr.bf16.mxu0 0
        %727 = vmatpush1.bf16.msra.mxu0 0
        %728 = vmatprep.subr.bf16.mxu0 0
        %729 = vmatpush1.bf16.msra.mxu0 0
        %730 = vmatprep.subr.bf16.mxu0 0
        %731 = vmatpush1.bf16.msra.mxu0 0
        %732 = vmatprep.subr.bf16.mxu0 0
        %733 = vmatpush1.bf16.msra.mxu0 0
        %734 = vmatprep.subr.bf16.mxu0 0
        %735 = vmatpush1.bf16.msra.mxu0 0
        %736 = vmatprep.subr.bf16.mxu0 0
        %737 = vmatpush1.bf16.msra.mxu0 0
        %738 = vmatprep.subr.bf16.mxu0 0
        %739 = vmatpush1.bf16.msra.mxu0 0
        %740 = vmatprep.subr.bf16.mxu0 0
        %741 = vmatpush1.bf16.msra.mxu0 0
        %742 = vmatprep.subr.bf16.mxu0 0
        %743 = vmatpush1.bf16.msra.mxu0 0
        %744 = vmatprep.subr.bf16.mxu0 0
        %745 = vmatpush1.bf16.msra.mxu0 0
        %746 = vmatprep.subr.bf16.mxu0 0
        %747 = vmatpush1.bf16.msra.mxu0 0
        %748 = vmatprep.mubr.bf16.mxu0 0
        %749 = vmatmul.mubr.bf16.gmra.mrb[0].mxu0 %v705
        %v750 = vpop.f32.mrb[0].mxu0
        %v751 = vadd.f32 %v646, %v750
        %v752 = vpop.f32.mrb[0].mxu0
        %v753 = vadd.f32 %v646, %v752
        %v754 = vpop.f32.mrb[0].mxu0
        %v755 = vadd.f32 %v651, %v754
        %v756 = vpop.f32.mrb[0].mxu0
        %v757 = vadd.f32 %v651, %v756
        %758 = vmatprep.mubr.bf16.mxu0 0
        %759 = vmatmul.mubr.bf16.gmra.mrb[0].mxu0 %v708
        %v760 = vpop.f32.mrb[0].mxu0
        %v761 = vadd.f32 %v656, %v760
        %v762 = vpop.f32.mrb[0].mxu0
        %v763 = vadd.f32 %v656, %v762
        %v764 = vpop.f32.mrb[0].mxu0
        %v765 = vadd.f32 %v661, %v764
        %v766 = vpop.f32.mrb[0].mxu0
        %v767 = vadd.f32 %v661, %v766
        %768 = vmatprep.mubr.bf16.mxu0 0
        %769 = vmatmul.mubr.bf16.gmra.mrb[0].mxu0 %v711
        %v770 = vpop.f32.mrb[0].mxu0
        %v771 = vadd.f32 %v666, %v770
        %v772 = vpop.f32.mrb[0].mxu0
        %v773 = vadd.f32 %v666, %v772
        %v774 = vpop.f32.mrb[0].mxu0
        %v775 = vadd.f32 %v671, %v774
        %v776 = vpop.f32.mrb[0].mxu0
        %v777 = vadd.f32 %v671, %v776
        %778 = vmatprep.mubr.bf16.mxu0 0
        %779 = vmatmul.mubr.bf16.gmra.mrb[0].mxu0 %v714
        %v780 = vpop.f32.mrb[0].mxu0
        %v781 = vadd.f32 %v676, %v780
        %v782 = vpop.f32.mrb[0].mxu0
        %v783 = vadd.f32 %v676, %v782
        %v784 = vpop.f32.mrb[0].mxu0
        %v785 = vadd.f32 %v681, %v784
        %v786 = vpop.f32.mrb[0].mxu0
        %v787 = vadd.f32 %v681, %v786
        %788 = vdwg.mxu0
        %v789 = vmax.f32 %v751, 0.0
        %v790 = vmax.f32 %v753, 0.0
        %v791 = vmax.f32 %v755, 0.0
        %v792 = vmax.f32 %v757, 0.0
        %v793 = vmax.f32 %v761, 0.0
        %v794 = vmax.f32 %v763, 0.0
        %v795 = vmax.f32 %v765, 0.0
        %v796 = vmax.f32 %v767, 0.0
        %v797 = vmax.f32 %v771, 0.0
        %v798 = vmax.f32 %v773, 0.0
        %v799 = vmax.f32 %v775, 0.0
        %v800 = vmax.f32 %v777, 0.0
        %v801 = vmax.f32 %v781, 0.0
        %v802 = vmax.f32 %v783, 0.0
        %v803 = vmax.f32 %v785, 0.0
        %v804 = vmax.f32 %v787, 0.0
        %v805 = vld [vmem:[%s5] sm:$0x1]
        %v806 = vpack.c.bf16 %v791, %v789
        %v807 = vpack.c.bf16 %v792, %v790
        %v808 = vpack.c.bf16 %v795, %v793
        %v809 = vpack.c.bf16 %v796, %v794
        %v810 = vpack.c.bf16 %v799, %v797
        %v811 = vpack.c.bf16 %v800, %v798
        %v812 = vpack.c.bf16 %v803, %v801
        %v813 = vpack.c.bf16 %v804, %v802
        %v814 = vld [vmem:[%s6] sm:$0x3]
        %816 = vset.pattern.permute.xlu0 0
        %817 = vperm.xlu0 %816, %v814
        %v818 = vpop.permute.xlu0 %817
        %v821 = vsel %vm703, %v805, 0
        %823 = vmatprep.subr.bf16.mxu0 %v807
        %824 = vmatpush1.bf16.msra.mxu0 %v806
        %825 = vmatprep.subr.bf16.mxu0 %v809
        %826 = vmatpush1.bf16.msra.mxu0 %v808
        %827 = vmatprep.subr.bf16.mxu0 %v811
        %828 = vmatpush1.bf16.msra.mxu0 %v810
        %829 = vmatprep.subr.bf16.mxu0 %v813
        %830 = vmatpush1.bf16.msra.mxu0 %v812
        %831 = vmatprep.subr.bf16.mxu0 0
        %832 = vmatpush1.bf16.msra.mxu0 0
        %833 = vmatprep.subr.bf16.mxu0 0
        %834 = vmatpush1.bf16.msra.mxu0 0
        %835 = vmatprep.subr.bf16.mxu0 0
        %836 = vmatpush1.bf16.msra.mxu0 0
        %837 = vmatprep.subr.bf16.mxu0 0
        %838 = vmatpush1.bf16.msra.mxu0 0
        %839 = vmatprep.subr.bf16.mxu0 0
        %840 = vmatpush1.bf16.msra.mxu0 0
        %841 = vmatprep.subr.bf16.mxu0 0
        %842 = vmatpush1.bf16.msra.mxu0 0
        %843 = vmatprep.subr.bf16.mxu0 0
        %844 = vmatpush1.bf16.msra.mxu0 0
        %845 = vmatprep.subr.bf16.mxu0 0
        %846 = vmatpush1.bf16.msra.mxu0 0
        %847 = vmatprep.subr.bf16.mxu0 0
        %848 = vmatpush1.bf16.msra.mxu0 0
        %849 = vmatprep.subr.bf16.mxu0 0
        %850 = vmatpush1.bf16.msra.mxu0 0
        %851 = vmatprep.subr.bf16.mxu0 0
        %852 = vmatpush1.bf16.msra.mxu0 0
        %853 = vmatprep.subr.bf16.mxu0 0
        %854 = vmatpush1.bf16.msra.mxu0 0
        %855 = vmatprep.mubr.bf16.mxu0 0
        %856 = vmatmul.mubr.bf16.gmra.mrb[0].mxu0 %v821
        %v857 = vpop.f32.mrb[0].mxu0
        %v858 = vadd.f32 %v818, %v857
        %v859 = vpop.f32.mrb[0].mxu0
        %v860 = vadd.f32 %v818, %v859
        %v861 = vpop.f32.mrb[0].mxu0
        %v862 = vpop.f32.mrb[0].mxu0
        %863 = vdwg.mxu0
        %v866 = vcombine.low %v858, %v860
        %v868 = vunpack.c.l.s4 1983009808
        %v869 = vunpack.c.0.s8 %v868
        %v870 = vlaneseq
        %v871 = vshrl.u32 %v870, 7
        %v872 = vsub.s32 %v869, %v871
        %v873 = vrot.slane %v866, %v872
        %875 = vst [vmem:[%s272] sm:$0xf] %v873
        %s876 = sand.u32 %s181, 1
        %s877 = scalar_lea.sflag [#allocation3], %s876
        %s878 = sand.u32 %s181, 1
        %s879 = smul.addr %s878, 4
        %s880 = scalar_lea.vmem [#allocation2], %s879
        // Predicated region
        $region49: #{tpu_custom_call.1} parent=47 // pred_check
          %p881 = pneg %p191
        $region50: #{tpu_custom_call.1} parent=47 // pred_check_branch
          %883 = sbr.rel (%p881) target = $region52
        $region51: #{tpu_custom_call.1} parent=47 // pred_region
          %s884 = smul.u32 2, %s21
          %s886 = ssub.s32 64, 64
          %887 = vsyncadd %s877, %s886
          %s888 = smul.addr %s884, 32
          %s889 = scalar_lea.hbm %s7, %s888
          %s891 = sshll.u32 %s880, 4
          %s892 = int_to_ptr.vmem [resolvable:$true] %s891
          %894 = dma.vmem_to_hbm [thread:$0]  %s892, 64, %s889, %s877
        $region52: #{tpu_custom_call.1} parent=47 // pred_fallthru
          _
      $region48: #{tpu_custom_call.1} parent=5 // pred_fallthru
        _
      %p895 = scmp.le.s32.totalorder 2, %s16
      // Predicated region
      $region53: #{tpu_custom_call.1} parent=5 // pred_check
        %p896 = pneg %p895
      $region54: #{tpu_custom_call.1} parent=5 // pred_check_branch
        %898 = sbr.rel (%p896) target = $region56
      $region55: #{tpu_custom_call.1} parent=5 // pred_region
        %s899 = ssub.s32 %s16, 2
        // Predicated region
        $region57: #{tpu_custom_call.1} parent=55 // pred_check
          %p900 = pneg %p197
        $region58: #{tpu_custom_call.1} parent=55 // pred_check_branch
          %902 = sbr.rel (%p900) target = $region60
        $region59: #{tpu_custom_call.1} parent=55 // pred_region
          %s903 = sand.u32 %s182, 1
          %s904 = scalar_lea.sflag [#allocation3], %s903
          %s905 = sand.u32 %s182, 1
          %s906 = smul.addr %s905, 4
          %s907 = scalar_lea.vmem [#allocation2], %s906
          %908 = dma.done %s904, 64
        $region60: #{tpu_custom_call.1} parent=55 // pred_fallthru
          _
      $region56: #{tpu_custom_call.1} parent=5 // pred_fallthru
        _
    $region6: #{tpu_custom_call.1} parent=1 // loop_footer
      %s20 = sadd.s32 1, %s16
    $region7: #{tpu_custom_call.1} parent=1 // loop_footer_branch
      %15 = sbr.rel target = $region3
    $region8: #{tpu_custom_call.1} parent=1 // loop_exit
      _
    %909 = vsyncpa [#allocation3], 1
    %s910 = scalar_lea.sflag [#allocation3], 1
    %911 = vsyncpa %s910, 1

</llo_original>
